<compile_context>
chip_gen: v6e
topology: v6e:2x2x1
jax: 0.10.0
libtpu: 0.0.40
codegen_flags: <defaults>
</compile_context>

<pallas_src>
import functools
import warnings

import jax
import jax.numpy as jnp
from jax.experimental import pallas as pl
from jax.experimental.pallas import tpu as pltpu

_VMEM_LIMIT_BYTES = 48 * 1024 * 1024  # <= v7x 64 MiB physical; ample on v5e/v6e.


def _round_up(x: int, m: int) -> int:
    return ((x + m - 1) // m) * m


def _cdiv(a: int, b: int) -> int:
    return -(-a // b)


def _tile_nk(in_f: int, out_f: int):
    """(tn, tk): lane-dense, divide the 128-padded dims exactly (no pad waste),
    tn <= 512 / tk <= 2048, and >= 2 out-tiles when possible (v7x has 2 TCs)."""
    out_128 = _round_up(out_f, 128)
    tn = out_128 if out_128 <= 128 else 128
    if out_128 > 128:
        for cand in (512, 384, 256):
            if out_128 % cand == 0 and out_128 // cand >= 2:
                tn = cand
                break
    in_128 = _round_up(in_f, 128)
    if in_128 <= 2048:
        tk = in_128
    else:
        tk = 128
        for cand in (2048, 1536, 1024, 512, 256):
            if in_128 % cand == 0:
                tk = cand
                break
    return tn, tk


def _tile_m(batch: int):
    """(tm, B_p): tm <= 512, multiple of 8, minimal batch padding."""
    b8 = _round_up(batch, 8)
    n_i = _cdiv(b8, 512)
    tm = _round_up(_cdiv(b8, n_i), 8)
    return tm, tm * n_i


def prepare_snn_params(weight, bias):
    """One-time parameter prep (do this at init, NOT per call): pad to tile
    boundaries, transpose to k-major [in_p, out_p], store the weight as bf16."""
    out_f, in_f = weight.shape
    tn, tk = _tile_nk(in_f, out_f)
    out_p = _round_up(out_f, tn)
    in_p = _round_up(in_f, tk)
    w_t = jnp.pad(weight.astype(jnp.float32),
                  ((0, out_p - out_f), (0, in_p - in_f))).T.astype(jnp.bfloat16)
    b_p = jnp.pad(bias.astype(jnp.float32), (0, out_p - out_f)).reshape(1, out_p)
    return w_t, b_p


# ---------------------------------------------------------------------------
# Single-timestep kernel (matches SNNLayer.forward)
# ---------------------------------------------------------------------------
def _snn_step_kernel(x_ref, w_ref, b_ref, mp_ref, spikes_ref, mp_out_ref,
                     *, threshold, decay, reset_voltage):
    """One (tm, tn) output tile; grid axis 2 sweeps in_features (K).
    mp_out_ref doubles as the f32 accumulator (VMEM-resident across K)."""
    k = pl.program_id(2)

    @pl.when(k == 0)
    def _():
        # Fold the bias add into accumulator initialization.
        mp_out_ref[...] = jnp.broadcast_to(b_ref[...], mp_out_ref.shape)

    # bf16 operands on the MXU, f32 accumulation.  Weight is pre-transposed to
    # [in, out], so this is a plain (m,k)x(k,n) contraction (no vxpose).
    mp_out_ref[...] += jnp.dot(x_ref[...].astype(jnp.bfloat16), w_ref[...],
                               preferred_element_type=jnp.float32)

    @pl.when(k == pl.num_programs(2) - 1)
    def _():
        v = decay * mp_ref[...] + mp_out_ref[...]
        spikes = (v >= threshold).astype(jnp.float32)
        # TODO(synk): emit spikes as bf16/int8 if the downstream layer allows.
        spikes_ref[...] = spikes
        mp_out_ref[...] = jnp.where(spikes > 0.0,
                                    jnp.full_like(v, reset_voltage), v)


@functools.partial(jax.jit,
                   static_argnames=("threshold", "decay", "reset_voltage"),
                   donate_argnames=("membrane_potential",))
def snn_layer_forward(x, weight_t, bias_p, membrane_potential,
                      threshold=1.0, decay=0.9, reset_voltage=0.0):
    """Single timestep (matches SNNLayer.forward).

    x:                  [B, in_f]      float32
    weight_t:           [in_p, out_p]  bfloat16  (from prepare_snn_params)
    bias_p:             [1, out_p]     float32   (from prepare_snn_params)
    membrane_potential: [B, out_f]     float32   (donated)
    Returns (spikes, new_membrane_potential), both [B, out_f] float32."""
    B, in_f = x.shape
    out_f = membrane_potential.shape[1]
    tn, tk = _tile_nk(in_f, out_f)
    tm, B_p = _tile_m(B)
    in_p, out_p = weight_t.shape
    assert in_p % tk == 0 and out_p % tn == 0, "params not from prepare_snn_params"

    x_p = jnp.pad(x, ((0, B_p - B), (0, in_p - in_f)))
    mp_p = jnp.pad(membrane_potential, ((0, B_p - B), (0, out_p - out_f)))

    grid = (B_p // tm, out_p // tn, in_p // tk)
    kernel = functools.partial(_snn_step_kernel, threshold=float(threshold),
                               decay=float(decay),
                               reset_voltage=float(reset_voltage))

    spikes_p, mp_new_p = pl.pallas_call(
        kernel,
        out_shape=(jax.ShapeDtypeStruct((B_p, out_p), jnp.float32),
                   jax.ShapeDtypeStruct((B_p, out_p), jnp.float32)),
        grid_spec=pltpu.PrefetchScalarGridSpec(
            num_scalar_prefetch=0,
            grid=grid,
            in_specs=[
                pl.BlockSpec((tm, tk), lambda i, j, k: (i, k)),   # x
                pl.BlockSpec((tk, tn), lambda i, j, k: (k, j)),   # weight [in, out] bf16
                pl.BlockSpec((1, tn), lambda i, j, k: (0, j)),    # bias
                pl.BlockSpec((tm, tn), lambda i, j, k: (i, j)),   # membrane potential
            ],
            out_specs=[
                pl.BlockSpec((tm, tn), lambda i, j, k: (i, j)),   # spikes
                pl.BlockSpec((tm, tn), lambda i, j, k: (i, j)),   # new membrane pot.
            ],
        ),
        input_output_aliases={3: 1},   # mp input buffer -> updated-mp output
        compiler_params=pltpu.CompilerParams(
            dimension_semantics=("parallel", "parallel", "arbitrary"),
            vmem_limit_bytes=_VMEM_LIMIT_BYTES),
    )(x_p, weight_t, bias_p, mp_p)

    return spikes_p[:B, :out_f], mp_new_p[:B, :out_f]


# ---------------------------------------------------------------------------
# Fused T-timestep kernel (the perf-review TODO)
# ---------------------------------------------------------------------------
def _snn_seq_kernel(x_ref, w_ref, b_ref, mp0_ref, spikes_ref, mp_out_ref,
                    state_ref, *, threshold, decay, reset_voltage):
    """grid = (i, j, t).  The weight/bias block indices are independent of t, so
    they stay VMEM-resident across all T steps; the membrane state is carried
    in a VMEM scratch; spikes are emitted per step."""
    t = pl.program_id(2)

    @pl.when(t == 0)
    def _():
        state_ref[...] = mp0_ref[...]

    y = jnp.dot(x_ref[...].astype(jnp.bfloat16), w_ref[...],
                preferred_element_type=jnp.float32) + b_ref[...]
    v = decay * state_ref[...] + y
    spikes = (v >= threshold).astype(jnp.float32)
    spikes_ref[...] = spikes
    state_ref[...] = jnp.where(spikes > 0.0, jnp.full_like(v, reset_voltage), v)

    @pl.when(t == pl.num_programs(2) - 1)
    def _():
        mp_out_ref[...] = state_ref[...]


@functools.partial(jax.jit,
                   static_argnames=("threshold", "decay", "reset_voltage"),
                   donate_argnames=("membrane_potential",))
def snn_layer_forward_sequence(xs, weight_t, bias_p, membrane_potential,
                               threshold=1.0, decay=0.9, reset_voltage=0.0):
    """Fused multi-timestep forward: xs is [T, B, in_f]; runs T LIF steps inside
    the kernel with the weight tile kept resident in VMEM (weight HBM traffic
    amortized by T).  Returns (spikes [T, B, out_f], final mp [B, out_f])."""
    T, B, in_f = xs.shape
    out_f = membrane_potential.shape[1]
    tn, tk = _tile_nk(in_f, out_f)
    tm, B_p = _tile_m(B)
    in_p, out_p = weight_t.shape
    assert out_p % tn == 0, "params not from prepare_snn_params"
    if in_p != tk:
        # TODO(synk): add a K grid axis to the fused-T kernel for in_features > 2048.
        raise NotImplementedError("fused-T kernel requires in_features <= 2048")

    xs_p = jnp.pad(xs, ((0, 0), (0, B_p - B), (0, in_p - in_f)))
    mp_p = jnp.pad(membrane_potential, ((0, B_p - B), (0, out_p - out_f)))

    grid = (B_p // tm, out_p // tn, T)
    kernel = functools.partial(_snn_seq_kernel, threshold=float(threshold),
                               decay=float(decay),
                               reset_voltage=float(reset_voltage))

    spikes_p, mp_new_p = pl.pallas_call(
        kernel,
        out_shape=(jax.ShapeDtypeStruct((T, B_p, out_p), jnp.float32),
                   jax.ShapeDtypeStruct((B_p, out_p), jnp.float32)),
        grid_spec=pltpu.PrefetchScalarGridSpec(
            num_scalar_prefetch=0,
            grid=grid,
            in_specs=[
                pl.BlockSpec((None, tm, in_p), lambda i, j, t: (t, i, 0)),  # x_t
                pl.BlockSpec((in_p, tn), lambda i, j, t: (0, j)),   # weight (t-invariant)
                pl.BlockSpec((1, tn), lambda i, j, t: (0, j)),      # bias (t-invariant)
                pl.BlockSpec((tm, tn), lambda i, j, t: (i, j)),     # initial mp
            ],
            out_specs=[
                pl.BlockSpec((None, tm, tn), lambda i, j, t: (t, i, j)),    # spikes[t]
                pl.BlockSpec((tm, tn), lambda i, j, t: (i, j)),             # final mp
            ],
            scratch_shapes=[pltpu.VMEM((tm, tn), jnp.float32)],             # carried state
        ),
        input_output_aliases={3: 1},
        compiler_params=pltpu.CompilerParams(
            dimension_semantics=("parallel", "parallel", "arbitrary"),
            vmem_limit_bytes=_VMEM_LIMIT_BYTES),
    )(xs_p, weight_t, bias_p, mp_p)

    return spikes_p[:, :B, :out_f], mp_new_p[:B, :out_f]


# ---------------------------------------------------------------------------
# Tests
# ---------------------------------------------------------------------------
def _make_layer_params(key, in_f, out_f):
    k1, k2 = jax.random.split(key)
    bound = 1.0 / (in_f ** 0.5)
    weight = jax.random.uniform(k1, (out_f, in_f), jnp.float32, -bound, bound)
    bias = jax.random.uniform(k2, (out_f,), jnp.float32, -bound, bound)
    return weight, bias


def _ref_linear_bf16(x, weight_t, bias, in_f, out_f):
    # Mirrors the kernel numerics: bf16 operands, f32 accumulation.
    return jnp.dot(x.astype(jnp.bfloat16), weight_t[:in_f, :out_f],
                   preferred_element_type=jnp.float32) + bias


def _run_step_case(key, B, in_f, out_f):
    kp, kx, km = jax.random.split(key, 3)
    weight, bias = _make_layer_params(kp, in_f, out_f)
    x = jax.random.normal(kx, (B, in_f), jnp.float32)
    mp = jax.random.normal(km, (B, out_f), jnp.float32)

    weight_t, bias_p = prepare_snn_params(weight, bias)

    # Reference, computed before the call (membrane_potential is donated).
    v = 0.9 * mp + _ref_linear_bf16(x, weight_t, bias, in_f, out_f)
    s_ref = (v >= 1.0).astype(jnp.float32)
    v_ref = jnp.where(s_ref > 0, jnp.zeros_like(v), v)

    spikes, mp_new = snn_layer_forward(x, weight_t, bias_p, mp,
                                       threshold=1.0, decay=0.9,
                                       reset_voltage=0.0)
    jax.block_until_ready((spikes, mp_new))

    assert spikes.shape == (B, out_f) and mp_new.shape == (B, out_f)
    assert jnp.allclose(spikes, s_ref, atol=1e-5), "spikes mismatch"
    assert jnp.allclose(mp_new, v_ref, atol=1e-3), "membrane potential mismatch"


def _run_seq_case(key, T, B, in_f, out_f):
    kp, kx, km = jax.random.split(key, 3)
    weight, bias = _make_layer_params(kp, in_f, out_f)
    xs = jax.random.normal(kx, (T, B, in_f), jnp.float32)
    mp0 = jax.random.normal(km, (B, out_f), jnp.float32)

    weight_t, bias_p = prepare_snn_params(weight, bias)

    # Reference T-step unroll, computed before the call (mp0 is donated).
    mp = mp0
    s_ref = []
    for t in range(T):
        v = 0.9 * mp + _ref_linear_bf16(xs[t], weight_t, bias, in_f, out_f)
        s = (v >= 1.0).astype(jnp.float32)
        mp = jnp.where(s > 0, jnp.zeros_like(v), v)
        s_ref.append(s)
    s_ref = jnp.stack(s_ref)

    spikes, mp_fin = snn_layer_forward_sequence(xs, weight_t, bias_p, mp0,
                                                threshold=1.0, decay=0.9,
                                                reset_voltage=0.0)
    jax.block_until_ready((spikes, mp_fin))

    assert spikes.shape == (T, B, out_f) and mp_fin.shape == (B, out_f)
    assert jnp.allclose(spikes, s_ref, atol=1e-5), "sequence spikes mismatch"
    assert jnp.allclose(mp_fin, mp, atol=1e-3), "final membrane potential mismatch"


if __name__ == "__main__":
    # Donation can legitimately be unusable for some padded shapes; keep the
    # run output clean.
    warnings.filterwarnings("ignore",
                            message="Some donated buffers were not usable")

    key = jax.random.PRNGKey(0)
    ka, kb, kc = jax.random.split(key, 3)

    # Single-timestep forward (matches SNNLayer.forward): aligned + non-aligned.
    _run_step_case(ka, B=8, in_f=32, out_f=64)
    _run_step_case(kb, B=5, in_f=20, out_f=50)

    # Fused T-timestep forward: weight VMEM-resident across T, state in scratch.
    _run_seq_case(kc, T=4, B=8, in_f=32, out_f=64)

    print("KERNEL_OK")
</pallas_src>

<mosaic_0001>
module attributes {stable_mosaic.version = 11 : i64} {
  func.func @_snn_step_kernel(%arg0: i32, %arg1: i32, %arg2: i32, %arg3: memref<8x128xf32, #tpu.memory_space<vmem>>, %arg4: memref<128x128xbf16, #tpu.memory_space<vmem>>, %arg5: memref<1x128xf32, #tpu.memory_space<vmem>>, %arg6: memref<8x128xf32, #tpu.memory_space<vmem>>, %arg7: memref<8x128xf32, #tpu.memory_space<vmem>>, %arg8: memref<8x128xf32, #tpu.memory_space<vmem>>) attributes {dimension_semantics = [#tpu.dimension_semantics<parallel>, #tpu.dimension_semantics<parallel>, #tpu.dimension_semantics<arbitrary>], iteration_bounds = array<i64: 1, 1, 1>, scalar_prefetch = 0 : i64, scratch_operands = 0 : i64, tpu.core_type = #tpu.core_type<tc>, window_params = [{transform_indices = @transform_0, window_bounds = array<i64: 8, 128>}, {transform_indices = @transform_1, window_bounds = array<i64: 128, 128>}, {transform_indices = @transform_2, window_bounds = array<i64: 1, 128>}, {transform_indices = @transform_3, window_bounds = array<i64: 8, 128>}, {transform_indices = @transform_4, window_bounds = array<i64: 8, 128>}, {transform_indices = @transform_5, window_bounds = array<i64: 8, 128>}]} {
    %c0_i32 = arith.constant 0 : i32
    %0 = arith.cmpi eq, %arg2, %c0_i32 : i32
    %1 = arith.extui %0 : i1 to i32
    %c0_i32_0 = arith.constant 0 : i32
    %2 = arith.cmpi ne, %1, %c0_i32_0 : i32
    scf.if %2 {
      %c0_10 = arith.constant 0 : index
      %c0_11 = arith.constant 0 : index
      %13 = vector.load %arg5[%c0_10, %c0_11] : memref<1x128xf32, #tpu.memory_space<vmem>>, vector<1x128xf32>
      %14 = vector.shape_cast %13 : vector<1x128xf32> to vector<1x128xf32>
      %15 = vector.broadcast %14 : vector<1x128xf32> to vector<8x128xf32>
      %c0_12 = arith.constant 0 : index
      %c0_13 = arith.constant 0 : index
      %16 = vector.load %arg8[%c0_12, %c0_13] : memref<8x128xf32, #tpu.memory_space<vmem>>, vector<8x128xf32>
      tpu.vector_store %arg8[%c0_12, %c0_13], %15 {strides = array<i32>} : memref<8x128xf32, #tpu.memory_space<vmem>>, vector<8x128xf32>,
    } else {
    }
    %c0 = arith.constant 0 : index
    %c0_1 = arith.constant 0 : index
    %3 = vector.load %arg8[%c0, %c0_1] : memref<8x128xf32, #tpu.memory_space<vmem>>, vector<8x128xf32>
    %c0_2 = arith.constant 0 : index
    %c0_3 = arith.constant 0 : index
    %4 = vector.load %arg3[%c0_2, %c0_3] : memref<8x128xf32, #tpu.memory_space<vmem>>, vector<8x128xf32>
    %5 = arith.truncf %4 : vector<8x128xf32> to vector<8x128xbf16>
    %c0_4 = arith.constant 0 : index
    %c0_5 = arith.constant 0 : index
    %6 = vector.load %arg4[%c0_4, %c0_5] : memref<128x128xbf16, #tpu.memory_space<vmem>>, vector<128x128xbf16>
    %cst = arith.constant dense<0.000000e+00> : vector<8x128xf32>
    %7 = tpu.matmul %5, %6, %cst {dimension_numbers = #tpu.dot_dimension_numbers<[1], [0], [0], [1], [0, 0, 1, 1], [], []>} : vector<8x128xbf16>, vector<128x128xbf16>, vector<8x128xf32> -> vector<8x128xf32>
    %8 = arith.addf %3, %7 : vector<8x128xf32>
    %c0_6 = arith.constant 0 : index
    %c0_7 = arith.constant 0 : index
    %9 = vector.load %arg8[%c0_6, %c0_7] : memref<8x128xf32, #tpu.memory_space<vmem>>, vector<8x128xf32>
    tpu.vector_store %arg8[%c0_6, %c0_7], %8 {strides = array<i32>} : memref<8x128xf32, #tpu.memory_space<vmem>>, vector<8x128xf32>,
    %c0_i32_8 = arith.constant 0 : i32
    %10 = arith.cmpi eq, %arg2, %c0_i32_8 : i32
    %11 = arith.extui %10 : i1 to i32
    %c0_i32_9 = arith.constant 0 : i32
    %12 = arith.cmpi ne, %11, %c0_i32_9 : i32
    scf.if %12 {
      %c0_10 = arith.constant 0 : index
      %c0_11 = arith.constant 0 : index
      %13 = vector.load %arg6[%c0_10, %c0_11] : memref<8x128xf32, #tpu.memory_space<vmem>>, vector<8x128xf32>
      %cst_12 = arith.constant 0.899999976 : f32
      %14 = vector.broadcast %cst_12 : f32 to vector<8x128xf32>
      %15 = arith.mulf %14, %13 : vector<8x128xf32>
      %c0_13 = arith.constant 0 : index
      %c0_14 = arith.constant 0 : index
      %16 = vector.load %arg8[%c0_13, %c0_14] : memref<8x128xf32, #tpu.memory_space<vmem>>, vector<8x128xf32>
      %17 = arith.addf %15, %16 : vector<8x128xf32>
      %cst_15 = arith.constant 1.000000e+00 : f32
      %18 = vector.broadcast %cst_15 : f32 to vector<8x128xf32>
      %19 = arith.cmpf oge, %17, %18 : vector<8x128xf32>
      %20 = arith.extui %19 : vector<8x128xi1> to vector<8x128xi32>
      %21 = arith.sitofp %20 : vector<8x128xi32> to vector<8x128xf32>
      %c0_16 = arith.constant 0 : index
      %c0_17 = arith.constant 0 : index
      %22 = vector.load %arg7[%c0_16, %c0_17] : memref<8x128xf32, #tpu.memory_space<vmem>>, vector<8x128xf32>
      tpu.vector_store %arg7[%c0_16, %c0_17], %21 {strides = array<i32>} : memref<8x128xf32, #tpu.memory_space<vmem>>, vector<8x128xf32>,
      %cst_18 = arith.constant 0.000000e+00 : f32
      %23 = vector.broadcast %cst_18 : f32 to vector<8x128xf32>
      %24 = arith.cmpf ogt, %21, %23 : vector<8x128xf32>
      %cst_19 = arith.constant 0.000000e+00 : f32
      %25 = vector.broadcast %cst_19 : f32 to vector<8x128xf32>
      %26 = arith.select %24, %25, %17 : vector<8x128xi1>, vector<8x128xf32>
      %c0_20 = arith.constant 0 : index
      %c0_21 = arith.constant 0 : index
      %27 = vector.load %arg8[%c0_20, %c0_21] : memref<8x128xf32, #tpu.memory_space<vmem>>, vector<8x128xf32>
      tpu.vector_store %arg8[%c0_20, %c0_21], %26 {strides = array<i32>} : memref<8x128xf32, #tpu.memory_space<vmem>>, vector<8x128xf32>,
    } else {
    }
    return
  }
  func.func @transform_0(%arg0: i32, %arg1: i32, %arg2: i32) -> (i32, i32) {
    %c0_i32 = arith.constant 0 : i32
    return %arg0, %arg2 : i32, i32
  }
  func.func @transform_1(%arg0: i32, %arg1: i32, %arg2: i32) -> (i32, i32) {
    %c0_i32 = arith.constant 0 : i32
    return %arg2, %arg1 : i32, i32
  }
  func.func @transform_2(%arg0: i32, %arg1: i32, %arg2: i32) -> (i32, i32) {
    %c0_i32 = arith.constant 0 : i32
    %c0_i32_0 = arith.constant 0 : i32
    return %c0_i32, %arg1 : i32, i32
  }
  func.func @transform_3(%arg0: i32, %arg1: i32, %arg2: i32) -> (i32, i32) {
    %c0_i32 = arith.constant 0 : i32
    return %arg0, %arg1 : i32, i32
  }
  func.func @transform_4(%arg0: i32, %arg1: i32, %arg2: i32) -> (i32, i32) {
    %c0_i32 = arith.constant 0 : i32
    return %arg0, %arg1 : i32, i32
  }
  func.func @transform_5(%arg0: i32, %arg1: i32, %arg2: i32) -> (i32, i32) {
    %c0_i32 = arith.constant 0 : i32
    return %arg0, %arg1 : i32, i32
  }
}

</mosaic_0001>

<llo_original>
// kernel: snn_layer_forward.1
$region0: #{snn_layer_forward.1}
  #allocation0 [shape = 'u32[]', space=smem, size = 0x4, offset = 0x4, fixed_abs, tag = 'smem constant byte address 0x4 - core index']
  #allocation1 [shape = 'u32[144,128]{1,0:T(1,128)}', space=vmem, size = 0x12000, scoped, tag = 'internal scratch']
  %s0 = inlined_call_operand.vmem [shape: f32[8,128], index: 0, kind: input, shape index: {}]
  %s1 = inlined_call_operand.hbm [shape: bf16[128,128], index: 1, kind: input, shape index: {}]
  %s2 = inlined_call_operand.vmem [shape: f32[1,128], index: 2, kind: input, shape index: {}]
  %s3 = inlined_call_operand.vmem [shape: f32[8,128], index: 3, kind: input, shape index: {}, may-alias: {3,5}]
  %s4 = inlined_call_operand.hbm [shape: f32[8,128], index: 4, kind: output, shape index: {0}]
  %s5 = inlined_call_operand.vmem [shape: f32[8,128], index: 5, kind: output, shape index: {1}, may-alias: {3,5}]
  %6 = xla_tuple %s4, %s5
  %s7 = sld [smem:[#allocation0]]
  $region46: #{snn_layer_forward.1} parent=0
    _
  %s9 = ssub.s32 1, %s7
  %s10 = scalar_select 0, %s9, %s7
  $region1: #{snn_layer_forward.1} parent=0
    #allocation2 [shape = 'u8[32768]{0}', space=vmem, size = 0x8000, scoped, tag = 'input window, operand 1, single buffered']
    #allocation3 [shape = 's32[1]{0}', space=sflag, size = 0x4, scoped, tag = 'scoped memory for snn_layer_forward.1']
    #allocation4 [shape = 's32[1]{0}', space=sflag, size = 0x4, scoped, tag = 'scoped memory for snn_layer_forward.1']
    #allocation5 [shape = 'u8[4096]{0}', space=vmem, size = 0x1000, scoped, tag = 'output window, operand 0, single buffered']
    %11 = vsyncpa [#allocation3], 0
    %12 = vsyncpa [#allocation4], 0
    // Predicated region
    $region2: #{snn_layer_forward.1} parent=1 // pred_check
      _
    $region3: #{snn_layer_forward.1} parent=1 // pred_check_branch
      %14 = sbr.rel (0) target = $region5
    $region4: #{snn_layer_forward.1} parent=1 // pred_region
      _
    $region5: #{snn_layer_forward.1} parent=1 // pred_fallthru
      _
    // Predicated region
    $region6: #{snn_layer_forward.1} parent=1 // pred_check
      _
    $region7: #{snn_layer_forward.1} parent=1 // pred_check_branch
      %16 = sbr.rel (0) target = $region9
    $region8: #{snn_layer_forward.1} parent=1 // pred_region
      %s18 = ssub.s32 1024, 1024
      %19 = vsyncadd [#allocation3], %s18
      %s20 = sshll.u32 [#allocation2], 4
      %s21 = int_to_ptr.vmem [resolvable:$true] %s20
      %26 = dma.hbm_to_vmem [thread:$0]  %s1, 1024, %s21, [#allocation3], 64, 64, 4
    $region9: #{snn_layer_forward.1} parent=1 // pred_fallthru
      _
    // Predicated region
    $region10: #{snn_layer_forward.1} parent=1 // pred_check
      _
    $region11: #{snn_layer_forward.1} parent=1 // pred_check_branch
      %28 = sbr.rel (0) target = $region13
    $region12: #{snn_layer_forward.1} parent=1 // pred_region
      _
    $region13: #{snn_layer_forward.1} parent=1 // pred_fallthru
      _
    // Predicated region
    $region14: #{snn_layer_forward.1} parent=1 // pred_check
      _
    $region15: #{snn_layer_forward.1} parent=1 // pred_check_branch
      %30 = sbr.rel (0) target = $region17
    $region16: #{snn_layer_forward.1} parent=1 // pred_region
      _
    $region17: #{snn_layer_forward.1} parent=1 // pred_fallthru
      _
    // Predicated region
    $region18: #{snn_layer_forward.1} parent=1 // pred_check
      _
    $region19: #{snn_layer_forward.1} parent=1 // pred_check_branch
      %32 = sbr.rel (0) target = $region21
    $region20: #{snn_layer_forward.1} parent=1 // pred_region
      %33 = dma.done [#allocation3], 1024
    $region21: #{snn_layer_forward.1} parent=1 // pred_fallthru
      _
    %p35 = scmp.eq.s32.totalorder 0, 0
    // Predicated region
    $region22: #{snn_layer_forward.1} parent=1 // pred_check
      %p36 = pneg %p35
    $region23: #{snn_layer_forward.1} parent=1 // pred_check_branch
      %38 = sbr.rel (%p36) target = $region25
    $region24: #{snn_layer_forward.1} parent=1 // pred_region
      %v39 = vld [vmem:[%s2] sm:$0x1]
      %v41 = vlaneseq
      %v42 = vshrl.u32 %v41, 7
      %v43 = vsub.s32 0, %v42
      %v44 = vrot.slane %v39, %v43
      %46 = vst [vmem:[%s5] sm:$0xff] %v44
    $region25: #{snn_layer_forward.1} parent=1 // pred_fallthru
      _
    %v47 = vld [vmem:[%s5] sm:$0xff]
    %v48 = vld [vmem:[%s0] sm:$0xff]
    %v49 = vpack.c.bf16 %v48, %v48
    %v50 = vld [vmem:[#allocation2] sm:$0xf]
    %v51 = vld [vmem:[#allocation2 + $0x4] sm:$0xf]
    %v52 = vld [vmem:[#allocation2 + $0x8] sm:$0xf]
    %v53 = vld [vmem:[#allocation2 + $0xc] sm:$0xf]
    %v54 = vld [vmem:[#allocation2 + $0x10] sm:$0xf]
    %v55 = vld [vmem:[#allocation2 + $0x14] sm:$0xf]
    %v56 = vld [vmem:[#allocation2 + $0x18] sm:$0xf]
    %v57 = vld [vmem:[#allocation2 + $0x1c] sm:$0xf]
    %v58 = vld [vmem:[#allocation2 + $0x20] sm:$0xf]
    %v59 = vld [vmem:[#allocation2 + $0x24] sm:$0xf]
    %v60 = vld [vmem:[#allocation2 + $0x28] sm:$0xf]
    %v61 = vld [vmem:[#allocation2 + $0x2c] sm:$0xf]
    %v62 = vld [vmem:[#allocation2 + $0x30] sm:$0xf]
    %v63 = vld [vmem:[#allocation2 + $0x34] sm:$0xf]
    %v64 = vld [vmem:[#allocation2 + $0x38] sm:$0xf]
    %v65 = vld [vmem:[#allocation2 + $0x3c] sm:$0xf]
    %v82 = vunpack.c.l.b16 %v50
    %v83 = vunpack.c.l.b16 %v51
    %v84 = vunpack.c.l.b16 %v52
    %v85 = vunpack.c.l.b16 %v53
    %v86 = vunpack.c.l.b16 %v54
    %v87 = vunpack.c.l.b16 %v55
    %v88 = vunpack.c.l.b16 %v56
    %v89 = vunpack.c.l.b16 %v57
    %v90 = vunpack.c.l.b16 %v58
    %v91 = vunpack.c.l.b16 %v59
    %v92 = vunpack.c.l.b16 %v60
    %v93 = vunpack.c.l.b16 %v61
    %v94 = vunpack.c.l.b16 %v62
    %v95 = vunpack.c.l.b16 %v63
    %v96 = vunpack.c.l.b16 %v64
    %v97 = vunpack.c.l.b16 %v65
    %v98 = vpack.c.b16 %v83, %v82
    %v99 = vpack.c.b16 %v85, %v84
    %v100 = vpack.c.b16 %v87, %v86
    %v101 = vpack.c.b16 %v89, %v88
    %v102 = vpack.c.b16 %v91, %v90
    %v103 = vpack.c.b16 %v93, %v92
    %v104 = vpack.c.b16 %v95, %v94
    %v105 = vpack.c.b16 %v97, %v96
    %114 = vmatprep.subr.bf16.mxu0 0
    %115 = vmatpush1.bf16.msra.mxu0 %v105
    %116 = vmatprep.subr.bf16.mxu0 0
    %117 = vmatpush1.bf16.msra.mxu0 %v104
    %118 = vmatprep.subr.bf16.mxu0 0
    %119 = vmatpush1.bf16.msra.mxu0 %v103
    %120 = vmatprep.subr.bf16.mxu0 0
    %121 = vmatpush1.bf16.msra.mxu0 %v102
    %122 = vmatprep.subr.bf16.mxu0 0
    %123 = vmatpush1.bf16.msra.mxu0 %v101
    %124 = vmatprep.subr.bf16.mxu0 0
    %125 = vmatpush1.bf16.msra.mxu0 %v100
    %126 = vmatprep.subr.bf16.mxu0 0
    %127 = vmatpush1.bf16.msra.mxu0 %v99
    %128 = vmatprep.subr.bf16.mxu0 0
    %129 = vmatpush1.bf16.msra.mxu0 %v98
    %130 = vmatprep.subr.bf16.mxu0 0
    %131 = vmatpush2.bf16.msra.mxu0 0
    %132 = vmatprep.subr.bf16.mxu0 0
    %133 = vmatpush2.bf16.msra.mxu0 0
    %134 = vmatprep.subr.bf16.mxu0 0
    %135 = vmatpush2.bf16.msra.mxu0 0
    %136 = vmatprep.subr.bf16.mxu0 0
    %137 = vmatpush2.bf16.msra.mxu0 0
    %138 = vmatprep.subr.bf16.mxu0 0
    %139 = vmatpush2.bf16.msra.mxu0 0
    %140 = vmatprep.subr.bf16.mxu0 0
    %141 = vmatpush2.bf16.msra.mxu0 0
    %142 = vmatprep.subr.bf16.mxu0 0
    %143 = vmatpush2.bf16.msra.mxu0 0
    %144 = vmatprep.subr.bf16.mxu0 0
    %145 = vmatpush2.bf16.msra.mxu0 0
    %146 = vmatprep.mubr.bf16.mxu0 0
    %147 = vmatmul.mubr.bf16.gmra.mxu0 %v49
    %v148 = vpop.f32.mrf.mxu0
    %v149 = vadd.f32 0.0, %v148
    %v150 = vpop.f32.mrf.mxu0
    %v151 = vpop.f32.mrf.mxu0
    %v152 = vpop.f32.mrf.mxu0
    %153 = vdwg.mxu0
    %v154 = vadd.f32 %v47, %v149
    %155 = vst [vmem:[%s5] sm:$0xff] %v154
    // Predicated region
    $region26: #{snn_layer_forward.1} parent=1 // pred_check
      %p156 = pneg %p35
    $region27: #{snn_layer_forward.1} parent=1 // pred_check_branch
      %158 = sbr.rel (%p156) target = $region29
    $region28: #{snn_layer_forward.1} parent=1 // pred_region
      %v159 = vld [vmem:[%s3] sm:$0xff]
      %v160 = vmul.f32 %v159, 0.9
      %v161 = vld [vmem:[%s5] sm:$0xff]
      %v162 = vadd.f32 %v160, %v161
      %vm163 = vcmp.ge.f32.partialorder %v162, 1.0
      %v164 = vsel %vm163, 1, 0
      %v165 = vcvt.s32.f32 %v164
      %166 = vst [vmem:[#allocation5] sm:$0xff] %v165
      %vm167 = vcmp.gt.f32.partialorder %v165, 0.0
      %v168 = vsel %vm167, 0.0, %v162
      %169 = vst [vmem:[%s5] sm:$0xff] %v168
    $region29: #{snn_layer_forward.1} parent=1 // pred_fallthru
      _
    // Predicated region
    $region30: #{snn_layer_forward.1} parent=1 // pred_check
      _
    $region31: #{snn_layer_forward.1} parent=1 // pred_check_branch
      %171 = sbr.rel (0) target = $region33
    $region32: #{snn_layer_forward.1} parent=1 // pred_region
      %s173 = ssub.s32 128, 128
      %174 = vsyncadd [#allocation4], %s173
      %s176 = sshll.u32 [#allocation5], 4
      %s177 = int_to_ptr.vmem [resolvable:$true] %s176
      %179 = dma.vmem_to_hbm [thread:$0]  %s177, 128, %s4, [#allocation4]
    $region33: #{snn_layer_forward.1} parent=1 // pred_fallthru
      _
    // Predicated region
    $region34: #{snn_layer_forward.1} parent=1 // pred_check
      _
    $region35: #{snn_layer_forward.1} parent=1 // pred_check_branch
      %181 = sbr.rel (0) target = $region37
    $region36: #{snn_layer_forward.1} parent=1 // pred_region
      _
    $region37: #{snn_layer_forward.1} parent=1 // pred_fallthru
      _
    // Predicated region
    $region38: #{snn_layer_forward.1} parent=1 // pred_check
      _
    $region39: #{snn_layer_forward.1} parent=1 // pred_check_branch
      %183 = sbr.rel (0) target = $region41
    $region40: #{snn_layer_forward.1} parent=1 // pred_region
      %184 = dma.done [#allocation4], 128
    $region41: #{snn_layer_forward.1} parent=1 // pred_fallthru
      _
    // Predicated region
    $region42: #{snn_layer_forward.1} parent=1 // pred_check
      _
    $region43: #{snn_layer_forward.1} parent=1 // pred_check_branch
      %186 = sbr.rel (0) target = $region45
    $region44: #{snn_layer_forward.1} parent=1 // pred_region
      _
    $region45: #{snn_layer_forward.1} parent=1 // pred_fallthru
      _
    %187 = vsyncpa [#allocation3], 1
    %188 = vsyncpa [#allocation4], 1

</llo_original>
